<compile_context>
chip_gen: v6e
topology: v6e:2x2x1
jax: 0.10.0
libtpu: 0.0.40
codegen_flags: <defaults>
</compile_context>

<pallas_src>
import jax
import jax.numpy as jnp
from jax.experimental import pallas as pl
from jax.experimental.pallas import tpu as pltpu


def _tanh_kernel(x_ref, o_ref):
    x = x_ref[...]
    if jnp.issubdtype(x.dtype, jnp.floating) and x.dtype != jnp.float32:
        # Explicit f32 compute for sub-32-bit floats (v5e EUP/VPU have no
        # native bf16 path); the EUP transcendental stays off the ld/st slots.
        o_ref[...] = jnp.tanh(x.astype(jnp.float32)).astype(o_ref.dtype)
    else:
        o_ref[...] = jnp.tanh(x)


# Widest lane-dense slab widths (multiples of 128) tried in order.
_WIDTH_CANDIDATES = (4096, 2048, 1024, 512, 256, 128)


def tanh_forward(x: jax.Array, *, block_bytes: int = 2 * 1024 * 1024) -> jax.Array:
    """Pallas-backed equivalent of Tanh.forward: elementwise torch.tanh(input)."""
    orig_shape = x.shape
    dtype = x.dtype
    total = x.size
    if total == 0:
        return jnp.tanh(x)

    itemsize = jnp.dtype(dtype).itemsize
    # Packed-sublane row granularity: 8 rows (f32), 16 (bf16/f16), 32 (int8).
    sub = 8 * max(1, 4 // itemsize)

    # Pick the widest lane width that divides the flat size exactly (no pad);
    # otherwise fall back to a fixed width and pad only the small remainder.
    width = next((w for w in _WIDTH_CANDIDATES if total % w == 0), None)
    if width is None:
        width = 512
        chunk = sub * width
        padded = ((total + chunk - 1) // chunk) * chunk
    else:
        padded = total

    rows = padded // width

    # ~block_bytes per block, rounded down to a multiple of the packed-sublane
    # count; clamp to the full slab for small inputs (full-dim block is legal).
    block_rows = max(sub, (block_bytes // (width * itemsize)) // sub * sub)
    if rows <= block_rows:
        block_rows = rows
        grid = (1,)
    else:
        grid = (pl.cdiv(rows, block_rows),)  # partial last block handled by Pallas

    x_flat = jnp.reshape(x, (-1,))
    if padded != total:
        x_flat = jnp.pad(x_flat, (0, padded - total))
    x2d = jnp.reshape(x_flat, (rows, width))

    out2d = pl.pallas_call(
        _tanh_kernel,
        out_shape=jax.ShapeDtypeStruct((rows, width), dtype),
        grid_spec=pltpu.PrefetchScalarGridSpec(
            num_scalar_prefetch=0,
            grid=grid,
            in_specs=[pl.BlockSpec((block_rows, width), lambda i: (i, 0))],
            out_specs=pl.BlockSpec((block_rows, width), lambda i: (i, 0)),
        ),
        compiler_params=pltpu.CompilerParams(
            dimension_semantics=("parallel",),
        ),
        cost_estimate=pl.CostEstimate(
            flops=0,
            transcendentals=padded,
            bytes_accessed=2 * padded * itemsize,
        ),
    )(x2d)

    if padded != total:
        out_flat = jnp.reshape(out2d, (-1,))[:total]
        return jnp.reshape(out_flat, orig_shape)
    return jnp.reshape(out2d, orig_shape)


if __name__ == "__main__":
    key = jax.random.PRNGKey(0)
    k0, k1, k2, k3 = jax.random.split(key, 4)

    # NCHW input consistent with the module: batch=2, channels=4, 16x16 spatial.
    x = jax.random.normal(k0, (2, 4, 16, 16), dtype=jnp.float32)
    y = jax.block_until_ready(tanh_forward(x))
    assert y.shape == x.shape and y.dtype == x.dtype
    assert jnp.allclose(y, jnp.tanh(x), atol=1e-6, rtol=1e-6)

    # Non-divisible element count exercises the (rare) pad path.
    x_odd = jax.random.normal(k1, (2, 3, 5, 7), dtype=jnp.float32)
    y_odd = jax.block_until_ready(tanh_forward(x_odd))
    assert y_odd.shape == x_odd.shape and y_odd.dtype == x_odd.dtype
    assert jnp.allclose(y_odd, jnp.tanh(x_odd), atol=1e-6, rtol=1e-6)

    # Small block budget exercises the multi-block (grid > 1) path.
    x_multi = jax.random.normal(k2, (2, 4, 64, 128), dtype=jnp.float32)
    y_multi = jax.block_until_ready(tanh_forward(x_multi, block_bytes=64 * 1024))
    assert jnp.allclose(y_multi, jnp.tanh(x_multi), atol=1e-6, rtol=1e-6)

    # bf16 exercises the dtype-aware packing + explicit-f32-compute path.
    x_bf16 = jax.random.normal(k3, (2, 4, 16, 16), dtype=jnp.bfloat16)
    y_bf16 = jax.block_until_ready(tanh_forward(x_bf16))
    assert y_bf16.shape == x_bf16.shape and y_bf16.dtype == jnp.bfloat16
    assert jnp.allclose(y_bf16.astype(jnp.float32),
                        jnp.tanh(x_bf16).astype(jnp.float32),
                        atol=2e-2, rtol=2e-2)

    print("KERNEL_OK")
</pallas_src>

<mosaic_0001>
module attributes {stable_mosaic.version = 11 : i64} {
  func.func @_tanh_kernel(%arg0: i32, %arg1: memref<1x2048xf32, #tpu.memory_space<vmem>>, %arg2: memref<1x2048xf32, #tpu.memory_space<vmem>>) attributes {dimension_semantics = [#tpu.dimension_semantics<parallel>], iteration_bounds = array<i64: 1>, scalar_prefetch = 0 : i64, scratch_operands = 0 : i64, tpu.core_type = #tpu.core_type<tc>, window_params = [{transform_indices = @transform_0, window_bounds = array<i64: 1, 2048>}, {transform_indices = @transform_1, window_bounds = array<i64: 1, 2048>}]} {
    %c0 = arith.constant 0 : index
    %c0_0 = arith.constant 0 : index
    %0 = vector.load %arg1[%c0, %c0_0] : memref<1x2048xf32, #tpu.memory_space<vmem>>, vector<1x2048xf32>
    %1 = math.tanh %0 : vector<1x2048xf32>
    %c0_1 = arith.constant 0 : index
    %c0_2 = arith.constant 0 : index
    %2 = vector.load %arg2[%c0_1, %c0_2] : memref<1x2048xf32, #tpu.memory_space<vmem>>, vector<1x2048xf32>
    tpu.vector_store %arg2[%c0_1, %c0_2], %1 {strides = array<i32>} : memref<1x2048xf32, #tpu.memory_space<vmem>>, vector<1x2048xf32>,
    return
  }
  func.func @transform_0(%arg0: i32) -> (i32, i32) {
    %c0_i32 = arith.constant 0 : i32
    %c0_i32_0 = arith.constant 0 : i32
    return %arg0, %c0_i32 : i32, i32
  }
  func.func @transform_1(%arg0: i32) -> (i32, i32) {
    %c0_i32 = arith.constant 0 : i32
    %c0_i32_0 = arith.constant 0 : i32
    return %arg0, %c0_i32 : i32, i32
  }
}

</mosaic_0001>

<llo_original>
// kernel: tpu_custom_call.1
$region0: #{tpu_custom_call.1}
  #allocation0 [shape = 'u32[]', space=smem, size = 0x4, offset = 0x4, fixed_abs, tag = 'smem constant byte address 0x4 - core index']
  #allocation1 [shape = 'u32[144,128]{1,0:T(1,128)}', space=vmem, size = 0x12000, scoped, tag = 'internal scratch']
  %s0 = inlined_call_operand.hbm [shape: f32[1,2048], index: 0, kind: input, shape index: {}]
  %s1 = inlined_call_operand.hbm [shape: f32[1,2048], index: 1, kind: output, shape index: {}]
  %s2 = sld [smem:[#allocation0]]
  $region18: #{tpu_custom_call.1} parent=0
    _
  %s4 = ssub.s32 1, %s2
  %s5 = scalar_select 0, %s4, %s2
  $region1: #{tpu_custom_call.1} parent=0
    #allocation2 [shape = 'u8[8192]{0}', space=vmem, size = 0x2000, scoped, tag = 'input window, operand 0, single buffered']
    #allocation3 [shape = 's32[1]{0}', space=sflag, size = 0x4, scoped, tag = 'scoped memory for tpu_custom_call.1']
    #allocation4 [shape = 's32[1]{0}', space=sflag, size = 0x4, scoped, tag = 'scoped memory for tpu_custom_call.1']
    #allocation5 [shape = 'u8[8192]{0}', space=vmem, size = 0x2000, scoped, tag = 'output window, operand 0, single buffered']
    %6 = vsyncpa [#allocation3], 0
    %7 = vsyncpa [#allocation4], 0
    // Predicated region
    $region2: #{tpu_custom_call.1} parent=1 // pred_check
      _
    $region3: #{tpu_custom_call.1} parent=1 // pred_check_branch
      %9 = sbr.rel (0) target = $region5
    $region4: #{tpu_custom_call.1} parent=1 // pred_region
      %s11 = ssub.s32 256, 256
      %12 = vsyncadd [#allocation3], %s11
      %s14 = sshll.u32 [#allocation2], 4
      %s15 = int_to_ptr.vmem [resolvable:$true] %s14
      %17 = dma.hbm_to_vmem [thread:$0]  %s0, 256, %s15, [#allocation3]
    $region5: #{tpu_custom_call.1} parent=1 // pred_fallthru
      _
    // Predicated region
    $region6: #{tpu_custom_call.1} parent=1 // pred_check
      _
    $region7: #{tpu_custom_call.1} parent=1 // pred_check_branch
      %19 = sbr.rel (0) target = $region9
    $region8: #{tpu_custom_call.1} parent=1 // pred_region
      %20 = dma.done [#allocation3], 256
    $region9: #{tpu_custom_call.1} parent=1 // pred_fallthru
      _
    %v21 = vld [vmem:[#allocation2] sm:$0xff]
    %v22 = vld [vmem:[#allocation2 + $0x8] sm:$0xff]
    %v23 = vtanh.pop %v21
    %v24 = vtanh.pop %v22
    %25 = vst [vmem:[#allocation5] sm:$0xff] %v23
    %26 = vst [vmem:[#allocation5 + $0x8] sm:$0xff] %v24
    // Predicated region
    $region10: #{tpu_custom_call.1} parent=1 // pred_check
      _
    $region11: #{tpu_custom_call.1} parent=1 // pred_check_branch
      %28 = sbr.rel (0) target = $region13
    $region12: #{tpu_custom_call.1} parent=1 // pred_region
      %s30 = ssub.s32 256, 256
      %31 = vsyncadd [#allocation4], %s30
      %s33 = sshll.u32 [#allocation5], 4
      %s34 = int_to_ptr.vmem [resolvable:$true] %s33
      %36 = dma.vmem_to_hbm [thread:$0]  %s34, 256, %s1, [#allocation4]
    $region13: #{tpu_custom_call.1} parent=1 // pred_fallthru
      _
    // Predicated region
    $region14: #{tpu_custom_call.1} parent=1 // pred_check
      _
    $region15: #{tpu_custom_call.1} parent=1 // pred_check_branch
      %38 = sbr.rel (0) target = $region17
    $region16: #{tpu_custom_call.1} parent=1 // pred_region
      %39 = dma.done [#allocation4], 256
    $region17: #{tpu_custom_call.1} parent=1 // pred_fallthru
      _
    %40 = vsyncpa [#allocation3], 1
    %41 = vsyncpa [#allocation4], 1

</llo_original>
